<compile_context>
chip_gen: v6e
topology: v6e:2x2x1
jax: 0.10.0
libtpu: 0.0.40
codegen_flags: <defaults>
</compile_context>

<pallas_src>
from functools import partial

import jax
import jax.numpy as jnp
from jax.experimental import pallas as pl
from jax.experimental.pallas import tpu as pltpu


def _round_up(x, m):
    return ((x + m - 1) // m) * m


def pfn_kernel(x_ref, w_ref, scale_ref, bias_ref, o_ref, *, last_layer, units):
    tn, p, cin = x_ref.shape

    # Linear (no bias): (tn*p, cin) @ (cin, units)  -> MXU, f32 accumulate.
    x = x_ref[...].reshape(tn * p, cin)
    y = jnp.dot(x, w_ref[...], preferred_element_type=jnp.float32)

    # Folded BatchNorm1d (eval mode) + ReLU  -> VPU (all math in f32).
    y = y * scale_ref[...] + bias_ref[...]
    y = jnp.maximum(y, 0.0)
    y = y.reshape(tn, p, units)

    # max over the points dim (dim=1, keepdim=True).
    y_max = jnp.max(y, axis=1, keepdims=True)  # (tn, 1, units)

    if last_layer:
        # Dense (tn, units) store; wrapper re-adds the singleton middle dim.
        o_ref[...] = y_max.reshape(tn, units).astype(o_ref.dtype)
    else:
        # Build the full concat tile and do ONE lane-dense store:
        # (tn, p, 2*units) flattened to (tn, p*2*units)  (last dim % 128 == 0
        # for realistic P/units, e.g. 8*64 = 512).
        y_rep = jnp.broadcast_to(y_max, (tn, p, units))
        full = jnp.concatenate([y, y_rep], axis=-1)          # (tn, p, 2u)
        o_ref[...] = full.reshape(tn, p * 2 * units).astype(o_ref.dtype)


def pfn_layer(inputs, weight, gamma, beta, running_mean, running_var,
              *, eps=1e-3, last_layer=False, tile_n=512):
    """inputs: (N, P, C_in) f32; weight: (units, C_in) as in nn.Linear (no bias)."""
    N, P, Cin = inputs.shape
    units = weight.shape[0]

    # Fold BatchNorm (running statistics, eval mode) into scale/bias.
    # TODO(synk): training-mode BatchNorm (batch statistics over all N*P rows)
    # would need a global reduction pass before normalization; not fused here.
    # (use_norm=False with a linear bias can be expressed as scale=1, bias=b.)
    inv_std = 1.0 / jnp.sqrt(running_var + eps)
    scale = (gamma * inv_std).reshape(1, units).astype(jnp.float32)
    bias = (beta - running_mean * gamma * inv_std).reshape(1, units).astype(jnp.float32)
    w_t = weight.T.astype(jnp.float32)  # (C_in, units)

    # Clamp the tile to the (8-rounded) problem size and pad N to a multiple
    # of the tile so dynamic pillar counts work with large tiles.
    tile_n_eff = max(8, min(tile_n, _round_up(N, 8)))
    N_pad = _round_up(N, tile_n_eff)
    if N_pad != N:
        inputs = jnp.pad(inputs, ((0, N_pad - N), (0, 0), (0, 0)))

    if last_layer:
        out_last = units
    else:
        out_last = P * 2 * units  # lane-dense flattened concat output

    out_shape = jax.ShapeDtypeStruct((N_pad, out_last), inputs.dtype)
    out_block = (tile_n_eff, out_last)

    # Explicit VMEM budget from the padded, double-buffered tile footprint
    # (input block pads Cin -> 128 lanes, P -> 8 sublanes).
    in_block_bytes = tile_n_eff * _round_up(P, 8) * _round_up(Cin, 128) * 4
    out_block_bytes = _round_up(tile_n_eff, 8) * _round_up(out_last, 128) * 4
    est = 2 * (in_block_bytes + out_block_bytes) + (1 << 20)
    vmem_limit = min(max(32 << 20, int(1.5 * est)), 48 << 20)

    out = pl.pallas_call(
        partial(pfn_kernel, last_layer=last_layer, units=units),
        out_shape=out_shape,
        grid_spec=pltpu.PrefetchScalarGridSpec(
            num_scalar_prefetch=0,
            grid=(N_pad // tile_n_eff,),
            in_specs=[
                pl.BlockSpec((tile_n_eff, P, Cin), lambda i: (i, 0, 0)),
                pl.BlockSpec((Cin, units), lambda i: (0, 0)),
                pl.BlockSpec((1, units), lambda i: (0, 0)),
                pl.BlockSpec((1, units), lambda i: (0, 0)),
            ],
            out_specs=pl.BlockSpec(out_block, lambda i: (i, 0)),
        ),
        compiler_params=pltpu.CompilerParams(
            dimension_semantics=("parallel",),
            vmem_limit_bytes=vmem_limit,
        ),
    )(inputs, w_t, scale, bias)

    out = out[:N]  # drop padded rows
    if last_layer:
        return out.reshape(N, 1, units)
    return out.reshape(N, P, 2 * units)  # free row-major reshape


def pfn_reference(inputs, weight, gamma, beta, running_mean, running_var,
                  *, eps=1e-3, last_layer=False):
    x = jnp.einsum("npc,uc->npu", inputs, weight)
    inv_std = 1.0 / jnp.sqrt(running_var + eps)
    x = (x - running_mean) * inv_std * gamma + beta
    x = jnp.maximum(x, 0.0)
    x_max = jnp.max(x, axis=1, keepdims=True)
    if last_layer:
        return x_max
    x_rep = jnp.broadcast_to(x_max, x.shape)
    return jnp.concatenate([x, x_rep], axis=2)


if __name__ == "__main__":
    # PFNLayer(in_channels=10, out_channels=64, use_norm=True, last_layer=False)
    # => units = 64 // 2 = 32
    in_channels = 10
    out_channels = 64
    units = out_channels // 2
    P = 8  # points per pillar

    key = jax.random.PRNGKey(0)
    k_x, k_w, k_g, k_b, k_m, k_v, k_x2 = jax.random.split(key, 7)

    weight = jax.random.normal(k_w, (units, in_channels), dtype=jnp.float32) * 0.1
    gamma = 1.0 + 0.1 * jax.random.normal(k_g, (units,), dtype=jnp.float32)
    beta = 0.1 * jax.random.normal(k_b, (units,), dtype=jnp.float32)
    running_mean = 0.05 * jax.random.normal(k_m, (units,), dtype=jnp.float32)
    running_var = 1.0 + 0.1 * jax.random.uniform(k_v, (units,), dtype=jnp.float32)

    # Case 1: concat output, N not divisible by the tile (exercises padding).
    N1 = 50
    x1 = jax.random.normal(k_x, (N1, P, in_channels), dtype=jnp.float32)
    out1 = pfn_layer(x1, weight, gamma, beta, running_mean, running_var,
                     eps=1e-3, last_layer=False, tile_n=32)
    out1 = jax.block_until_ready(out1)
    ref1 = pfn_reference(x1, weight, gamma, beta, running_mean, running_var,
                         eps=1e-3, last_layer=False)
    assert out1.shape == (N1, P, 2 * units), out1.shape
    assert jnp.allclose(out1, ref1, atol=1e-4, rtol=1e-4), \
        float(jnp.max(jnp.abs(out1 - ref1)))

    # Case 2: last_layer=True (max-only output).
    N2 = 16
    x2 = jax.random.normal(k_x2, (N2, P, in_channels), dtype=jnp.float32)
    out2 = pfn_layer(x2, weight, gamma, beta, running_mean, running_var,
                     eps=1e-3, last_layer=True, tile_n=512)
    out2 = jax.block_until_ready(out2)
    ref2 = pfn_reference(x2, weight, gamma, beta, running_mean, running_var,
                         eps=1e-3, last_layer=True)
    assert out2.shape == (N2, 1, units), out2.shape
    assert jnp.allclose(out2, ref2, atol=1e-4, rtol=1e-4), \
        float(jnp.max(jnp.abs(out2 - ref2)))

    print("KERNEL_OK")
</pallas_src>

<mosaic_0001>
module attributes {stable_mosaic.version = 11 : i64} {
  func.func @pfn_kernel(%arg0: i32, %arg1: memref<32x8x10xf32, #tpu.memory_space<vmem>>, %arg2: memref<10x32xf32, #tpu.memory_space<vmem>>, %arg3: memref<1x32xf32, #tpu.memory_space<vmem>>, %arg4: memref<1x32xf32, #tpu.memory_space<vmem>>, %arg5: memref<32x512xf32, #tpu.memory_space<vmem>>) attributes {dimension_semantics = [#tpu.dimension_semantics<parallel>], iteration_bounds = array<i64: 2>, scalar_prefetch = 0 : i64, scratch_operands = 0 : i64, tpu.core_type = #tpu.core_type<tc>, window_params = [{transform_indices = @transform_0, window_bounds = array<i64: 32, 8, 10>}, {pipeline_mode = #tpu.pipeline_mode<synchronous>, transform_indices = @transform_1, window_bounds = array<i64: 10, 32>}, {pipeline_mode = #tpu.pipeline_mode<synchronous>, transform_indices = @transform_2, window_bounds = array<i64: 1, 32>}, {pipeline_mode = #tpu.pipeline_mode<synchronous>, transform_indices = @transform_3, window_bounds = array<i64: 1, 32>}, {transform_indices = @transform_4, window_bounds = array<i64: 32, 512>}]} {
    %c0 = arith.constant 0 : index
    %c0_0 = arith.constant 0 : index
    %c0_1 = arith.constant 0 : index
    %0 = vector.load %arg1[%c0, %c0_0, %c0_1] : memref<32x8x10xf32, #tpu.memory_space<vmem>>, vector<32x8x10xf32>
    %1 = vector.shape_cast %0 : vector<32x8x10xf32> to vector<256x10xf32>
    %c0_2 = arith.constant 0 : index
    %c0_3 = arith.constant 0 : index
    %2 = vector.load %arg2[%c0_2, %c0_3] : memref<10x32xf32, #tpu.memory_space<vmem>>, vector<10x32xf32>
    %cst = arith.constant dense<0.000000e+00> : vector<256x32xf32>
    %3 = tpu.matmul %1, %2, %cst {dimension_numbers = #tpu.dot_dimension_numbers<[1], [0], [0], [1], [0, 0, 1, 1], [], []>} : vector<256x10xf32>, vector<10x32xf32>, vector<256x32xf32> -> vector<256x32xf32>
    %c0_4 = arith.constant 0 : index
    %c0_5 = arith.constant 0 : index
    %4 = vector.load %arg3[%c0_4, %c0_5] : memref<1x32xf32, #tpu.memory_space<vmem>>, vector<1x32xf32>
    %5 = vector.broadcast %4 : vector<1x32xf32> to vector<256x32xf32>
    %6 = arith.mulf %3, %5 : vector<256x32xf32>
    %c0_6 = arith.constant 0 : index
    %c0_7 = arith.constant 0 : index
    %7 = vector.load %arg4[%c0_6, %c0_7] : memref<1x32xf32, #tpu.memory_space<vmem>>, vector<1x32xf32>
    %8 = vector.broadcast %7 : vector<1x32xf32> to vector<256x32xf32>
    %9 = arith.addf %6, %8 : vector<256x32xf32>
    %cst_8 = arith.constant 0.000000e+00 : f32
    %10 = vector.broadcast %cst_8 : f32 to vector<256x32xf32>
    %11 = arith.maximumf %9, %10 : vector<256x32xf32>
    %12 = vector.shape_cast %11 : vector<256x32xf32> to vector<32x8x32xf32>
    %cst_9 = arith.constant dense<0xFF800000> : vector<32x32xf32>
    %13 = vector.multi_reduction <maximumf>, %12, %cst_9 [1] : vector<32x8x32xf32> to vector<32x32xf32>
    %14 = vector.shape_cast %13 : vector<32x32xf32> to vector<32x1x32xf32>
    %15 = vector.shape_cast %14 : vector<32x1x32xf32> to vector<32x1x32xf32>
    %16 = vector.broadcast %15 : vector<32x1x32xf32> to vector<32x8x32xf32>
    %17 = tpu.concatenate %12, %16 in 2 : vector<32x8x32xf32>, vector<32x8x32xf32> -> vector<32x8x64xf32>
    %18 = vector.shape_cast %17 : vector<32x8x64xf32> to vector<32x512xf32>
    %c0_10 = arith.constant 0 : index
    %c0_11 = arith.constant 0 : index
    %19 = vector.load %arg5[%c0_10, %c0_11] : memref<32x512xf32, #tpu.memory_space<vmem>>, vector<32x512xf32>
    tpu.vector_store %arg5[%c0_10, %c0_11], %18 {strides = array<i32>} : memref<32x512xf32, #tpu.memory_space<vmem>>, vector<32x512xf32>,
    return
  }
  func.func @transform_0(%arg0: i32) -> (i32, i32, i32) {
    %c0_i32 = arith.constant 0 : i32
    %c0_i32_0 = arith.constant 0 : i32
    %c0_i32_1 = arith.constant 0 : i32
    return %arg0, %c0_i32, %c0_i32_0 : i32, i32, i32
  }
  func.func @transform_1(%arg0: i32) -> (i32, i32) {
    %c0_i32 = arith.constant 0 : i32
    %c0_i32_0 = arith.constant 0 : i32
    %c0_i32_1 = arith.constant 0 : i32
    return %c0_i32, %c0_i32_0 : i32, i32
  }
  func.func @transform_2(%arg0: i32) -> (i32, i32) {
    %c0_i32 = arith.constant 0 : i32
    %c0_i32_0 = arith.constant 0 : i32
    %c0_i32_1 = arith.constant 0 : i32
    return %c0_i32, %c0_i32_0 : i32, i32
  }
  func.func @transform_3(%arg0: i32) -> (i32, i32) {
    %c0_i32 = arith.constant 0 : i32
    %c0_i32_0 = arith.constant 0 : i32
    %c0_i32_1 = arith.constant 0 : i32
    return %c0_i32, %c0_i32_0 : i32, i32
  }
  func.func @transform_4(%arg0: i32) -> (i32, i32) {
    %c0_i32 = arith.constant 0 : i32
    %c0_i32_0 = arith.constant 0 : i32
    return %arg0, %c0_i32 : i32, i32
  }
}

</mosaic_0001>

<llo_original>
// kernel: tpu_custom_call.1
$region0: #{tpu_custom_call.1}
  #allocation0 [shape = 'u32[]', space=smem, size = 0x4, offset = 0x4, fixed_abs, tag = 'smem constant byte address 0x4 - core index']
  #allocation1 [shape = 'u32[144,128]{1,0:T(1,128)}', space=vmem, size = 0x12000, scoped, tag = 'internal scratch']
  %s0 = inlined_call_operand.vmem [shape: f32[64,8,10], index: 0, kind: input, shape index: {}]
  %s1 = inlined_call_operand.vmem [shape: f32[10,32], index: 1, kind: input, shape index: {}]
  %s2 = inlined_call_operand.vmem [shape: f32[1,32], index: 2, kind: input, shape index: {}]
  %s3 = inlined_call_operand.vmem [shape: f32[1,32], index: 3, kind: input, shape index: {}]
  %s4 = inlined_call_operand.hbm [shape: f32[64,512], index: 4, kind: output, shape index: {}]
  %s5 = sld [smem:[#allocation0]]
  $region49: #{tpu_custom_call.1} parent=0
    _
  %s7 = ssub.s32 1, %s5
  %s8 = scalar_select 0, %s7, %s5
  $region1: #{tpu_custom_call.1} parent=0
    #allocation2 [shape = 'u8[131072]{0}', space=vmem, size = 0x20000, scoped, tag = 'output window, operand 0']
    #allocation3 [shape = 's32[2]{0}', space=sflag, size = 0x8, scoped, tag = 'scoped memory for tpu_custom_call.1']
    %9 = vsyncpa [#allocation3], 0
    %s10 = scalar_lea.sflag [#allocation3], 1
    %11 = vsyncpa %s10, 0
    loop: start=0, step=1, limit=4
    $region2: #{tpu_custom_call.1} parent=1 // loop_pre_header
      _
    $region3: #{tpu_custom_call.1} parent=1 // loop_header
      %s13 = sphi 0, %s17
      %p14 = scmp.ge.s32.totalorder %s13, 4
      %s23 = sphi 0, %s25
      %s26 = sphi 0, %s23
      %s27 = sphi 0, %s26
      %s43 = sphi 0, %s27
      %s47 = sphi 0, %s47
      %s49 = sphi 0, %s47
      %s50 = sphi 0, %s49
      %s64 = sphi 0, %s50
      %s68 = sphi 0, %s68
      %s70 = sphi 0, %s68
      %s71 = sphi 0, %s70
      %s85 = sphi 0, %s71
      %s89 = sphi 0, %s89
      %s91 = sphi 0, %s89
      %s92 = sphi 0, %s91
      %s106 = sphi 0, %s92
      %s112 = sphi 0, %s114
      %s115 = sphi 0, %s112
      %s116 = sphi 0, %s115
      %s132 = sphi 0, %s116
    $region4: #{tpu_custom_call.1} parent=1 // loop_header_branch
      %16 = sbr.rel (%p14) target = $region8
    $region5: #{tpu_custom_call.1} parent=1 // loop_body
      %s18 = ssub.s32 %s13, 1
      %s19 = ssub.s32 %s13, 2
      %s20 = sadd.s32 %s13, 1
      %s21 = ssub.s32 %s13, %s20
      %p22 = scmp.eq.s32.totalorder %s21, 0
      %s24 = sadd.s32 %s23, 1
      %s25 = scalar_select %p22, %s23, %s24
      %p28 = pneg %p22
      %p29 = scmp.eq.s32.totalorder %s13, 1
      %p30 = por %p28, %p29
      %p31 = scmp.ne.s32.totalorder %s23, %s26
      %p32 = scmp.eq.s32.totalorder %s13, 0
      %p33 = por %p31, %p32
      %p34 = scmp.ne.s32.totalorder %s23, %s26
      %p35 = scmp.eq.s32.totalorder %s18, 1
      %p36 = por %p34, %p35
      %p37 = scmp.ne.s32.totalorder %s26, %s27
      %p38 = scmp.eq.s32.totalorder %s18, 0
      %p39 = por %p37, %p38
      %p40 = scmp.ne.s32.totalorder %s26, %s27
      %p41 = scmp.eq.s32.totalorder %s19, 1
      %p42 = por %p40, %p41
      %p44 = scmp.ne.s32.totalorder %s27, %s43
      %p45 = scmp.eq.s32.totalorder %s19, 0
      %p46 = por %p44, %p45
      %s48 = sadd.s32 %s47, 1
      %p51 = scmp.eq.s32.totalorder %s13, 1
      %p52 = scmp.ne.s32.totalorder %s47, %s49
      %p53 = scmp.eq.s32.totalorder %s13, 0
      %p54 = por %p52, %p53
      %p55 = scmp.ne.s32.totalorder %s47, %s49
      %p56 = scmp.eq.s32.totalorder %s18, 1
      %p57 = por %p55, %p56
      %p58 = scmp.ne.s32.totalorder %s49, %s50
      %p59 = scmp.eq.s32.totalorder %s18, 0
      %p60 = por %p58, %p59
      %p61 = scmp.ne.s32.totalorder %s49, %s50
      %p62 = scmp.eq.s32.totalorder %s19, 1
      %p63 = por %p61, %p62
      %p65 = scmp.ne.s32.totalorder %s50, %s64
      %p66 = scmp.eq.s32.totalorder %s19, 0
      %p67 = por %p65, %p66
      %s69 = sadd.s32 %s68, 1
      %p72 = scmp.eq.s32.totalorder %s13, 1
      %p73 = scmp.ne.s32.totalorder %s68, %s70
      %p74 = scmp.eq.s32.totalorder %s13, 0
      %p75 = por %p73, %p74
      %p76 = scmp.ne.s32.totalorder %s68, %s70
      %p77 = scmp.eq.s32.totalorder %s18, 1
      %p78 = por %p76, %p77
      %p79 = scmp.ne.s32.totalorder %s70, %s71
      %p80 = scmp.eq.s32.totalorder %s18, 0
      %p81 = por %p79, %p80
      %p82 = scmp.ne.s32.totalorder %s70, %s71
      %p83 = scmp.eq.s32.totalorder %s19, 1
      %p84 = por %p82, %p83
      %p86 = scmp.ne.s32.totalorder %s71, %s85
      %p87 = scmp.eq.s32.totalorder %s19, 0
      %p88 = por %p86, %p87
      %s90 = sadd.s32 %s89, 1
      %p93 = scmp.eq.s32.totalorder %s13, 1
      %p94 = scmp.ne.s32.totalorder %s89, %s91
      %p95 = scmp.eq.s32.totalorder %s13, 0
      %p96 = por %p94, %p95
      %p97 = scmp.ne.s32.totalorder %s89, %s91
      %p98 = scmp.eq.s32.totalorder %s18, 1
      %p99 = por %p97, %p98
      %p100 = scmp.ne.s32.totalorder %s91, %s92
      %p101 = scmp.eq.s32.totalorder %s18, 0
      %p102 = por %p100, %p101
      %p103 = scmp.ne.s32.totalorder %s91, %s92
      %p104 = scmp.eq.s32.totalorder %s19, 1
      %p105 = por %p103, %p104
      %p107 = scmp.ne.s32.totalorder %s92, %s106
      %p108 = scmp.eq.s32.totalorder %s19, 0
      %p109 = por %p107, %p108
      %s110 = ssub.s32 %s13, %s20
      %p111 = scmp.eq.s32.totalorder %s110, 0
      %s113 = sadd.s32 %s112, 1
      %s114 = scalar_select %p111, %s112, %s113
      %p117 = pneg %p111
      %p118 = scmp.eq.s32.totalorder %s13, 1
      %p119 = por %p117, %p118
      %p120 = scmp.ne.s32.totalorder %s112, %s115
      %p121 = scmp.eq.s32.totalorder %s13, 0
      %p122 = por %p120, %p121
      %p123 = scmp.ne.s32.totalorder %s112, %s115
      %p124 = scmp.eq.s32.totalorder %s18, 1
      %p125 = por %p123, %p124
      %p126 = scmp.ne.s32.totalorder %s115, %s116
      %p127 = scmp.eq.s32.totalorder %s18, 0
      %p128 = por %p126, %p127
      %p129 = scmp.ne.s32.totalorder %s115, %s116
      %p130 = scmp.eq.s32.totalorder %s19, 1
      %p131 = por %p129, %p130
      %p133 = scmp.ne.s32.totalorder %s116, %s132
      %p134 = scmp.eq.s32.totalorder %s19, 0
      %p135 = por %p133, %p134
      %p136 = scmp.le.s32.totalorder 1, %s13
      %p137 = scmp.lt.s32.totalorder %s13, 3
      %p138 = pnand %p136, %p137
      %p139 = pneg %p138
      // Predicated region
      $region9: #{tpu_custom_call.1} parent=5 // pred_check
        _
      $region10: #{tpu_custom_call.1} parent=5 // pred_check_branch
        %141 = sbr.rel (%p138) target = $region12
      $region11: #{tpu_custom_call.1} parent=5 // pred_region
        %s142 = ssub.s32 %s13, 1
        // Predicated region
        $region13: #{tpu_custom_call.1} parent=11 // pred_check
          %p143 = pneg %p60
        $region14: #{tpu_custom_call.1} parent=11 // pred_check_branch
          %145 = sbr.rel (%p143) target = $region16
        $region15: #{tpu_custom_call.1} parent=11 // pred_region
          _
        $region16: #{tpu_custom_call.1} parent=11 // pred_fallthru
          _
        // Predicated region
        $region17: #{tpu_custom_call.1} parent=11 // pred_check
          %p146 = pneg %p81
        $region18: #{tpu_custom_call.1} parent=11 // pred_check_branch
          %148 = sbr.rel (%p146) target = $region20
        $region19: #{tpu_custom_call.1} parent=11 // pred_region
          _
        $region20: #{tpu_custom_call.1} parent=11 // pred_fallthru
          _
        // Predicated region
        $region21: #{tpu_custom_call.1} parent=11 // pred_check
          %p149 = pneg %p102
        $region22: #{tpu_custom_call.1} parent=11 // pred_check_branch
          %151 = sbr.rel (%p149) target = $region24
        $region23: #{tpu_custom_call.1} parent=11 // pred_region
          _
        $region24: #{tpu_custom_call.1} parent=11 // pred_fallthru
          _
      $region12: #{tpu_custom_call.1} parent=5 // pred_fallthru
        _
      %p152 = scmp.lt.s32.totalorder %s13, 2
      // Predicated region
      $region25: #{tpu_custom_call.1} parent=5 // pred_check
        %p153 = pneg %p152
      $region26: #{tpu_custom_call.1} parent=5 // pred_check_branch
        %155 = sbr.rel (%p153) target = $region28
      $region27: #{tpu_custom_call.1} parent=5 // pred_region
        // Predicated region
        $region29: #{tpu_custom_call.1} parent=27 // pred_check
          %p156 = pneg %p33
        $region30: #{tpu_custom_call.1} parent=27 // pred_check_branch
          %158 = sbr.rel (%p156) target = $region32
        $region31: #{tpu_custom_call.1} parent=27 // pred_region
          %s159 = smul.u32 32, %s13
          %p160 = scmp.lt.s32.totalorder %s159, 63
          %s161 = scalar_select %p160, %s159, 63
          %s162 = smul.addr %s161, 8
          %s163 = scalar_lea.vmem %s0, %s162
          %s164 = smul.u32 32, %s13
        $region32: #{tpu_custom_call.1} parent=27 // pred_fallthru
          _
      $region28: #{tpu_custom_call.1} parent=5 // pred_fallthru
        _
      %p165 = scmp.le.s32.totalorder 1, %s13
      %p166 = scmp.lt.s32.totalorder %s13, 3
      %p167 = pnand %p165, %p166
      %p168 = pneg %p167
      // Predicated region
      $region33: #{tpu_custom_call.1} parent=5 // pred_check
        _
      $region34: #{tpu_custom_call.1} parent=5 // pred_check_branch
        %170 = sbr.rel (%p167) target = $region36
      $region35: #{tpu_custom_call.1} parent=5 // pred_region
        %s171 = ssub.s32 %s13, 1
        %s172 = smul.u32 32, %s18
        %p173 = scmp.lt.s32.totalorder %s172, 63
        %s174 = scalar_select %p173, %s172, 63
        %s175 = smul.addr %s174, 8
        %s176 = scalar_lea.vmem %s0, %s175
        %p177 = pneg %p39
        %p178 = pneg %p36
        %p179 = pneg %p60
        %p180 = pneg %p57
        %p181 = pneg %p81
        %p182 = pneg %p78
        %p183 = pneg %p102
        %p184 = pneg %p99
        %p185 = pneg %p128
        %p186 = pneg %p125
        %s187 = sand.u32 %s115, 1
        %s188 = scalar_lea.sflag [#allocation3], %s187
        %s189 = sand.u32 %s115, 1
        %s190 = smul.addr %s189, 128
        %s191 = scalar_lea.vmem [#allocation2], %s190
        %s192 = smul.u32 32, %s18
        %p193 = scmp.lt.s32.totalorder %s192, 63
        %s194 = scalar_select %p193, %s192, 63
        %s195 = smul.addr %s194, 8
        %s196 = scalar_lea.vmem %s0, %s195
        %s197 = smul.u32 32, %s18
        %s198 = smul.u32 4, %s18
        %v199 = vld [vmem:[%s196] sm:$0xff]
        %v200 = vld [vmem:[%s196 + $0x8] sm:$0xff]
        %v201 = vld [vmem:[%s196 + $0x10] sm:$0xff]
        %v202 = vld [vmem:[%s196 + $0x18] sm:$0xff]
        %v203 = vld [vmem:[%s196 + $0x20] sm:$0xff]
        %v204 = vld [vmem:[%s196 + $0x28] sm:$0xff]
        %v205 = vld [vmem:[%s196 + $0x30] sm:$0xff]
        %v206 = vld [vmem:[%s196 + $0x38] sm:$0xff]
        %v207 = vld [vmem:[%s196 + $0x40] sm:$0xff]
        %v208 = vld [vmem:[%s196 + $0x48] sm:$0xff]
        %v209 = vld [vmem:[%s196 + $0x50] sm:$0xff]
        %v210 = vld [vmem:[%s196 + $0x58] sm:$0xff]
        %v211 = vld [vmem:[%s196 + $0x60] sm:$0xff]
        %v212 = vld [vmem:[%s196 + $0x68] sm:$0xff]
        %v213 = vld [vmem:[%s196 + $0x70] sm:$0xff]
        %v214 = vld [vmem:[%s196 + $0x78] sm:$0xff]
        %v215 = vld [vmem:[%s196 + $0x80] sm:$0xff]
        %v216 = vld [vmem:[%s196 + $0x88] sm:$0xff]
        %v217 = vld [vmem:[%s196 + $0x90] sm:$0xff]
        %v218 = vld [vmem:[%s196 + $0x98] sm:$0xff]
        %v219 = vld [vmem:[%s196 + $0xa0] sm:$0xff]
        %v220 = vld [vmem:[%s196 + $0xa8] sm:$0xff]
        %v221 = vld [vmem:[%s196 + $0xb0] sm:$0xff]
        %v222 = vld [vmem:[%s196 + $0xb8] sm:$0xff]
        %v223 = vld [vmem:[%s196 + $0xc0] sm:$0xff]
        %v224 = vld [vmem:[%s196 + $0xc8] sm:$0xff]
        %v225 = vld [vmem:[%s196 + $0xd0] sm:$0xff]
        %v226 = vld [vmem:[%s196 + $0xd8] sm:$0xff]
        %v227 = vld [vmem:[%s196 + $0xe0] sm:$0xff]
        %v228 = vld [vmem:[%s196 + $0xe8] sm:$0xff]
        %v229 = vld [vmem:[%s196 + $0xf0] sm:$0xff]
        %v230 = vld [vmem:[%s196 + $0xf8] sm:$0xff]
        %v231 = vld [vmem:[%s1] sm:$0xff]
        %v232 = vld [vmem:[%s1 + $0x8] sm:$0x3]
        %vm233 = vcmask 80896
        %v235 = vsel %vm233, %v199, 0
        %v238 = vsel %vm233, %v200, 0
        %v241 = vsel %vm233, %v201, 0
        %v244 = vsel %vm233, %v202, 0
        %v247 = vsel %vm233, %v203, 0
        %v250 = vsel %vm233, %v204, 0
        %v253 = vsel %vm233, %v205, 0
        %v256 = vsel %vm233, %v206, 0
        %v259 = vsel %vm233, %v207, 0
        %v262 = vsel %vm233, %v208, 0
        %v265 = vsel %vm233, %v209, 0
        %v268 = vsel %vm233, %v210, 0
        %v271 = vsel %vm233, %v211, 0
        %v274 = vsel %vm233, %v212, 0
        %v277 = vsel %vm233, %v213, 0
        %v280 = vsel %vm233, %v214, 0
        %v283 = vsel %vm233, %v215, 0
        %v286 = vsel %vm233, %v216, 0
        %v289 = vsel %vm233, %v217, 0
        %v292 = vsel %vm233, %v218, 0
        %v295 = vsel %vm233, %v219, 0
        %v298 = vsel %vm233, %v220, 0
        %v301 = vsel %vm233, %v221, 0
        %v304 = vsel %vm233, %v222, 0
        %v307 = vsel %vm233, %v223, 0
        %v310 = vsel %vm233, %v224, 0
        %v313 = vsel %vm233, %v225, 0
        %v316 = vsel %vm233, %v226, 0
        %v319 = vsel %vm233, %v227, 0
        %v322 = vsel %vm233, %v228, 0
        %v325 = vsel %vm233, %v229, 0
        %v328 = vsel %vm233, %v230, 0
        %vm330 = vcmask 1041408
        %v332 = vsel %vm330, %v232, 0
        %334 = vmatprep.subr.mxu0 0.0
        %335 = vmatpush1.msra.mxu0 0.0
        %336 = vmatprep.subr.mxu0 0.0
        %337 = vmatpush1.msra.mxu0 0.0
        %338 = vmatprep.subr.mxu0 0.0
        %339 = vmatpush1.msra.mxu0 0.0
        %340 = vmatprep.subr.mxu0 0.0
        %341 = vmatpush1.msra.mxu0 0.0
        %342 = vmatprep.subr.mxu0 0.0
        %343 = vmatpush1.msra.mxu0 0.0
        %344 = vmatprep.subr.mxu0 0.0
        %345 = vmatpush1.msra.mxu0 0.0
        %346 = vmatprep.subr.mxu0 0.0
        %347 = vmatpush1.msra.mxu0 0.0
        %348 = vmatprep.subr.mxu0 0.0
        %349 = vmatpush1.msra.mxu0 0.0
        %350 = vmatprep.subr.mxu0 0.0
        %351 = vmatpush1.msra.mxu0 0.0
        %352 = vmatprep.subr.mxu0 0.0
        %353 = vmatpush1.msra.mxu0 0.0
        %354 = vmatprep.subr.mxu0 0.0
        %355 = vmatpush1.msra.mxu0 0.0
        %356 = vmatprep.subr.mxu0 0.0
        %357 = vmatpush1.msra.mxu0 0.0
        %358 = vmatprep.subr.mxu0 0.0
        %359 = vmatpush1.msra.mxu0 0.0
        %360 = vmatprep.subr.mxu0 0.0
        %361 = vmatpush1.msra.mxu0 0.0
        %362 = vmatprep.subr.mxu0 0.0
        %363 = vmatpush1.msra.mxu0 %v332
        %364 = vmatprep.subr.mxu0 0.0
        %365 = vmatpush1.msra.mxu0 %v231
        %366 = vmatprep.subr.mxu0 0.0
        %367 = vmatpush2.msra.mxu0 0.0
        %368 = vmatprep.subr.mxu0 0.0
        %369 = vmatpush2.msra.mxu0 0.0
        %370 = vmatprep.subr.mxu0 0.0
        %371 = vmatpush2.msra.mxu0 0.0
        %372 = vmatprep.subr.mxu0 0.0
        %373 = vmatpush2.msra.mxu0 0.0
        %374 = vmatprep.subr.mxu0 0.0
        %375 = vmatpush2.msra.mxu0 0.0
        %376 = vmatprep.subr.mxu0 0.0
        %377 = vmatpush2.msra.mxu0 0.0
        %378 = vmatprep.subr.mxu0 0.0
        %379 = vmatpush2.msra.mxu0 0.0
        %380 = vmatprep.subr.mxu0 0.0
        %381 = vmatpush2.msra.mxu0 0.0
        %382 = vmatprep.subr.mxu0 0.0
        %383 = vmatpush2.msra.mxu0 0.0
        %384 = vmatprep.subr.mxu0 0.0
        %385 = vmatpush2.msra.mxu0 0.0
        %386 = vmatprep.subr.mxu0 0.0
        %387 = vmatpush2.msra.mxu0 0.0
        %388 = vmatprep.subr.mxu0 0.0
        %389 = vmatpush2.msra.mxu0 0.0
        %390 = vmatprep.subr.mxu0 0.0
        %391 = vmatpush2.msra.mxu0 0.0
        %392 = vmatprep.subr.mxu0 0.0
        %393 = vmatpush2.msra.mxu0 0.0
        %394 = vmatprep.subr.mxu0 0.0
        %395 = vmatpush2.msra.mxu0 0.0
        %396 = vmatprep.subr.mxu0 0.0
        %397 = vmatpush2.msra.mxu0 0.0
        %398 = vmatprep.mubr.f32.mxu0 0.0
        %399 = vmatmul.mubr.f32.gmra.mxu0 %v235
        %v400 = vpop.f32.mrf.mxu0
        %v401 = vadd.f32 0.0, %v400
        %v402 = vpop.f32.mrf.mxu0
        %403 = vmatprep.mubr.f32.mxu0 0.0
        %404 = vmatmul.mubr.f32.gmra.mxu0 %v238
        %v405 = vpop.f32.mrf.mxu0
        %v406 = vadd.f32 0.0, %v405
        %v407 = vpop.f32.mrf.mxu0
        %408 = vmatprep.mubr.f32.mxu0 0.0
        %409 = vmatmul.mubr.f32.gmra.mxu0 %v241
        %v410 = vpop.f32.mrf.mxu0
        %v411 = vadd.f32 0.0, %v410
        %v412 = vpop.f32.mrf.mxu0
        %413 = vmatprep.mubr.f32.mxu0 0.0
        %414 = vmatmul.mubr.f32.gmra.mxu0 %v244
        %v415 = vpop.f32.mrf.mxu0
        %v416 = vadd.f32 0.0, %v415
        %v417 = vpop.f32.mrf.mxu0
        %418 = vmatprep.mubr.f32.mxu0 0.0
        %419 = vmatmul.mubr.f32.gmra.mxu0 %v247
        %v420 = vpop.f32.mrf.mxu0
        %v421 = vadd.f32 0.0, %v420
        %v422 = vpop.f32.mrf.mxu0
        %423 = vmatprep.mubr.f32.mxu0 0.0
        %424 = vmatmul.mubr.f32.gmra.mxu0 %v250
        %v425 = vpop.f32.mrf.mxu0
        %v426 = vadd.f32 0.0, %v425
        %v427 = vpop.f32.mrf.mxu0
        %428 = vmatprep.mubr.f32.mxu0 0.0
        %429 = vmatmul.mubr.f32.gmra.mxu0 %v253
        %v430 = vpop.f32.mrf.mxu0
        %v431 = vadd.f32 0.0, %v430
        %v432 = vpop.f32.mrf.mxu0
        %433 = vmatprep.mubr.f32.mxu0 0.0
        %434 = vmatmul.mubr.f32.gmra.mxu0 %v256
        %v435 = vpop.f32.mrf.mxu0
        %v436 = vadd.f32 0.0, %v435
        %v437 = vpop.f32.mrf.mxu0
        %438 = vmatprep.mubr.f32.mxu0 0.0
        %439 = vmatmul.mubr.f32.gmra.mxu0 %v259
        %v440 = vpop.f32.mrf.mxu0
        %v441 = vadd.f32 0.0, %v440
        %v442 = vpop.f32.mrf.mxu0
        %443 = vmatprep.mubr.f32.mxu0 0.0
        %444 = vmatmul.mubr.f32.gmra.mxu0 %v262
        %v445 = vpop.f32.mrf.mxu0
        %v446 = vadd.f32 0.0, %v445
        %v447 = vpop.f32.mrf.mxu0
        %448 = vmatprep.mubr.f32.mxu0 0.0
        %449 = vmatmul.mubr.f32.gmra.mxu0 %v265
        %v450 = vpop.f32.mrf.mxu0
        %v451 = vadd.f32 0.0, %v450
        %v452 = vpop.f32.mrf.mxu0
        %453 = vmatprep.mubr.f32.mxu0 0.0
        %454 = vmatmul.mubr.f32.gmra.mxu0 %v268
        %v455 = vpop.f32.mrf.mxu0
        %v456 = vadd.f32 0.0, %v455
        %v457 = vpop.f32.mrf.mxu0
        %458 = vmatprep.mubr.f32.mxu0 0.0
        %459 = vmatmul.mubr.f32.gmra.mxu0 %v271
        %v460 = vpop.f32.mrf.mxu0
        %v461 = vadd.f32 0.0, %v460
        %v462 = vpop.f32.mrf.mxu0
        %463 = vmatprep.mubr.f32.mxu0 0.0
        %464 = vmatmul.mubr.f32.gmra.mxu0 %v274
        %v465 = vpop.f32.mrf.mxu0
        %v466 = vadd.f32 0.0, %v465
        %v467 = vpop.f32.mrf.mxu0
        %468 = vmatprep.mubr.f32.mxu0 0.0
        %469 = vmatmul.mubr.f32.gmra.mxu0 %v277
        %v470 = vpop.f32.mrf.mxu0
        %v471 = vadd.f32 0.0, %v470
        %v472 = vpop.f32.mrf.mxu0
        %473 = vmatprep.mubr.f32.mxu0 0.0
        %474 = vmatmul.mubr.f32.gmra.mxu0 %v280
        %v475 = vpop.f32.mrf.mxu0
        %v476 = vadd.f32 0.0, %v475
        %v477 = vpop.f32.mrf.mxu0
        %478 = vmatprep.mubr.f32.mxu0 0.0
        %479 = vmatmul.mubr.f32.gmra.mxu0 %v283
        %v480 = vpop.f32.mrf.mxu0
        %v481 = vadd.f32 0.0, %v480
        %v482 = vpop.f32.mrf.mxu0
        %483 = vmatprep.mubr.f32.mxu0 0.0
        %484 = vmatmul.mubr.f32.gmra.mxu0 %v286
        %v485 = vpop.f32.mrf.mxu0
        %v486 = vadd.f32 0.0, %v485
        %v487 = vpop.f32.mrf.mxu0
        %488 = vmatprep.mubr.f32.mxu0 0.0
        %489 = vmatmul.mubr.f32.gmra.mxu0 %v289
        %v490 = vpop.f32.mrf.mxu0
        %v491 = vadd.f32 0.0, %v490
        %v492 = vpop.f32.mrf.mxu0
        %493 = vmatprep.mubr.f32.mxu0 0.0
        %494 = vmatmul.mubr.f32.gmra.mxu0 %v292
        %v495 = vpop.f32.mrf.mxu0
        %v496 = vadd.f32 0.0, %v495
        %v497 = vpop.f32.mrf.mxu0
        %498 = vmatprep.mubr.f32.mxu0 0.0
        %499 = vmatmul.mubr.f32.gmra.mxu0 %v295
        %v500 = vpop.f32.mrf.mxu0
        %v501 = vadd.f32 0.0, %v500
        %v502 = vpop.f32.mrf.mxu0
        %503 = vmatprep.mubr.f32.mxu0 0.0
        %504 = vmatmul.mubr.f32.gmra.mxu0 %v298
        %v505 = vpop.f32.mrf.mxu0
        %v506 = vadd.f32 0.0, %v505
        %v507 = vpop.f32.mrf.mxu0
        %508 = vmatprep.mubr.f32.mxu0 0.0
        %509 = vmatmul.mubr.f32.gmra.mxu0 %v301
        %v510 = vpop.f32.mrf.mxu0
        %v511 = vadd.f32 0.0, %v510
        %v512 = vpop.f32.mrf.mxu0
        %513 = vmatprep.mubr.f32.mxu0 0.0
        %514 = vmatmul.mubr.f32.gmra.mxu0 %v304
        %v515 = vpop.f32.mrf.mxu0
        %v516 = vadd.f32 0.0, %v515
        %v517 = vpop.f32.mrf.mxu0
        %518 = vmatprep.mubr.f32.mxu0 0.0
        %519 = vmatmul.mubr.f32.gmra.mxu0 %v307
        %v520 = vpop.f32.mrf.mxu0
        %v521 = vadd.f32 0.0, %v520
        %v522 = vpop.f32.mrf.mxu0
        %523 = vmatprep.mubr.f32.mxu0 0.0
        %524 = vmatmul.mubr.f32.gmra.mxu0 %v310
        %v525 = vpop.f32.mrf.mxu0
        %v526 = vadd.f32 0.0, %v525
        %v527 = vpop.f32.mrf.mxu0
        %528 = vmatprep.mubr.f32.mxu0 0.0
        %529 = vmatmul.mubr.f32.gmra.mxu0 %v313
        %v530 = vpop.f32.mrf.mxu0
        %v531 = vadd.f32 0.0, %v530
        %v532 = vpop.f32.mrf.mxu0
        %533 = vmatprep.mubr.f32.mxu0 0.0
        %534 = vmatmul.mubr.f32.gmra.mxu0 %v316
        %v535 = vpop.f32.mrf.mxu0
        %v536 = vadd.f32 0.0, %v535
        %v537 = vpop.f32.mrf.mxu0
        %538 = vmatprep.mubr.f32.mxu0 0.0
        %539 = vmatmul.mubr.f32.gmra.mxu0 %v319
        %v540 = vpop.f32.mrf.mxu0
        %v541 = vadd.f32 0.0, %v540
        %v542 = vpop.f32.mrf.mxu0
        %543 = vmatprep.mubr.f32.mxu0 0.0
        %544 = vmatmul.mubr.f32.gmra.mxu0 %v322
        %v545 = vpop.f32.mrf.mxu0
        %v546 = vadd.f32 0.0, %v545
        %v547 = vpop.f32.mrf.mxu0
        %548 = vmatprep.mubr.f32.mxu0 0.0
        %549 = vmatmul.mubr.f32.gmra.mxu0 %v325
        %v550 = vpop.f32.mrf.mxu0
        %v551 = vadd.f32 0.0, %v550
        %v552 = vpop.f32.mrf.mxu0
        %553 = vmatprep.mubr.f32.mxu0 0.0
        %554 = vmatmul.mubr.f32.gmra.mxu0 %v328
        %v555 = vpop.f32.mrf.mxu0
        %v556 = vadd.f32 0.0, %v555
        %v557 = vpop.f32.mrf.mxu0
        %558 = vdwg.mxu0
        %v559 = vld [vmem:[%s2] sm:$0x1]
        %v561 = vlaneseq
        %v562 = vshrl.u32 %v561, 7
        %v563 = vsub.s32 0, %v562
        %v564 = vrot.slane %v559, %v563
        %v566 = vmul.f32 %v401, %v564
        %v567 = vmul.f32 %v406, %v564
        %v568 = vmul.f32 %v411, %v564
        %v569 = vmul.f32 %v416, %v564
        %v570 = vmul.f32 %v421, %v564
        %v571 = vmul.f32 %v426, %v564
        %v572 = vmul.f32 %v431, %v564
        %v573 = vmul.f32 %v436, %v564
        %v574 = vmul.f32 %v441, %v564
        %v575 = vmul.f32 %v446, %v564
        %v576 = vmul.f32 %v451, %v564
        %v577 = vmul.f32 %v456, %v564
        %v578 = vmul.f32 %v461, %v564
        %v579 = vmul.f32 %v466, %v564
        %v580 = vmul.f32 %v471, %v564
        %v581 = vmul.f32 %v476, %v564
        %v582 = vmul.f32 %v481, %v564
        %v583 = vmul.f32 %v486, %v564
        %v584 = vmul.f32 %v491, %v564
        %v585 = vmul.f32 %v496, %v564
        %v586 = vmul.f32 %v501, %v564
        %v587 = vmul.f32 %v506, %v564
        %v588 = vmul.f32 %v511, %v564
        %v589 = vmul.f32 %v516, %v564
        %v590 = vmul.f32 %v521, %v564
        %v591 = vmul.f32 %v526, %v564
        %v592 = vmul.f32 %v531, %v564
        %v593 = vmul.f32 %v536, %v564
        %v594 = vmul.f32 %v541, %v564
        %v595 = vmul.f32 %v546, %v564
        %v596 = vmul.f32 %v551, %v564
        %v597 = vmul.f32 %v556, %v564
        %v598 = vld [vmem:[%s3] sm:$0x1]
        %v600 = vlaneseq
        %v601 = vshrl.u32 %v600, 7
        %v602 = vsub.s32 0, %v601
        %v603 = vrot.slane %v598, %v602
        %v605 = vadd.f32 %v566, %v603
        %v606 = vadd.f32 %v567, %v603
        %v607 = vadd.f32 %v568, %v603
        %v608 = vadd.f32 %v569, %v603
        %v609 = vadd.f32 %v570, %v603
        %v610 = vadd.f32 %v571, %v603
        %v611 = vadd.f32 %v572, %v603
        %v612 = vadd.f32 %v573, %v603
        %v613 = vadd.f32 %v574, %v603
        %v614 = vadd.f32 %v575, %v603
        %v615 = vadd.f32 %v576, %v603
        %v616 = vadd.f32 %v577, %v603
        %v617 = vadd.f32 %v578, %v603
        %v618 = vadd.f32 %v579, %v603
        %v619 = vadd.f32 %v580, %v603
        %v620 = vadd.f32 %v581, %v603
        %v621 = vadd.f32 %v582, %v603
        %v622 = vadd.f32 %v583, %v603
        %v623 = vadd.f32 %v584, %v603
        %v624 = vadd.f32 %v585, %v603
        %v625 = vadd.f32 %v586, %v603
        %v626 = vadd.f32 %v587, %v603
        %v627 = vadd.f32 %v588, %v603
        %v628 = vadd.f32 %v589, %v603
        %v629 = vadd.f32 %v590, %v603
        %v630 = vadd.f32 %v591, %v603
        %v631 = vadd.f32 %v592, %v603
        %v632 = vadd.f32 %v593, %v603
        %v633 = vadd.f32 %v594, %v603
        %v634 = vadd.f32 %v595, %v603
        %v635 = vadd.f32 %v596, %v603
        %v636 = vadd.f32 %v597, %v603
        %v637 = vmax.f32 %v605, 0.0
        %v638 = vmax.f32 %v606, 0.0
        %v639 = vmax.f32 %v607, 0.0
        %v640 = vmax.f32 %v608, 0.0
        %v641 = vmax.f32 %v609, 0.0
        %v642 = vmax.f32 %v610, 0.0
        %v643 = vmax.f32 %v611, 0.0
        %v644 = vmax.f32 %v612, 0.0
        %v645 = vmax.f32 %v613, 0.0
        %v646 = vmax.f32 %v614, 0.0
        %v647 = vmax.f32 %v615, 0.0
        %v648 = vmax.f32 %v616, 0.0
        %v649 = vmax.f32 %v617, 0.0
        %v650 = vmax.f32 %v618, 0.0
        %v651 = vmax.f32 %v619, 0.0
        %v652 = vmax.f32 %v620, 0.0
        %v653 = vmax.f32 %v621, 0.0
        %v654 = vmax.f32 %v622, 0.0
        %v655 = vmax.f32 %v623, 0.0
        %v656 = vmax.f32 %v624, 0.0
        %v657 = vmax.f32 %v625, 0.0
        %v658 = vmax.f32 %v626, 0.0
        %v659 = vmax.f32 %v627, 0.0
        %v660 = vmax.f32 %v628, 0.0
        %v661 = vmax.f32 %v629, 0.0
        %v662 = vmax.f32 %v630, 0.0
        %v663 = vmax.f32 %v631, 0.0
        %v664 = vmax.f32 %v632, 0.0
        %v665 = vmax.f32 %v633, 0.0
        %v666 = vmax.f32 %v634, 0.0
        %v667 = vmax.f32 %v635, 0.0
        %v668 = vmax.f32 %v636, 0.0
        %vm669 = vcmask 261120
        %v670 = vsel %vm669, %v637, -inf
        %v671 = vrot.slane %v670, 4
        %v672 = vmax.f32 %v670, %v671
        %v673 = vrot.slane %v672, 2
        %v674 = vmax.f32 %v672, %v673
        %v675 = vrot.slane %v674, 1
        %v676 = vmax.f32 %v674, %v675
        %v677 = vsel %vm669, %v638, -inf
        %v678 = vrot.slane %v677, 4
        %v679 = vmax.f32 %v677, %v678
        %v680 = vrot.slane %v679, 2
        %v681 = vmax.f32 %v679, %v680
        %v682 = vrot.slane %v681, 1
        %v683 = vmax.f32 %v681, %v682
        %v684 = vsel %vm669, %v639, -inf
        %v685 = vrot.slane %v684, 4
        %v686 = vmax.f32 %v684, %v685
        %v687 = vrot.slane %v686, 2
        %v688 = vmax.f32 %v686, %v687
        %v689 = vrot.slane %v688, 1
        %v690 = vmax.f32 %v688, %v689
        %v691 = vsel %vm669, %v640, -inf
        %v692 = vrot.slane %v691, 4
        %v693 = vmax.f32 %v691, %v692
        %v694 = vrot.slane %v693, 2
        %v695 = vmax.f32 %v693, %v694
        %v696 = vrot.slane %v695, 1
        %v697 = vmax.f32 %v695, %v696
        %v698 = vsel %vm669, %v641, -inf
        %v699 = vrot.slane %v698, 4
        %v700 = vmax.f32 %v698, %v699
        %v701 = vrot.slane %v700, 2
        %v702 = vmax.f32 %v700, %v701
        %v703 = vrot.slane %v702, 1
        %v704 = vmax.f32 %v702, %v703
        %v705 = vsel %vm669, %v642, -inf
        %v706 = vrot.slane %v705, 4
        %v707 = vmax.f32 %v705, %v706
        %v708 = vrot.slane %v707, 2
        %v709 = vmax.f32 %v707, %v708
        %v710 = vrot.slane %v709, 1
        %v711 = vmax.f32 %v709, %v710
        %v712 = vsel %vm669, %v643, -inf
        %v713 = vrot.slane %v712, 4
        %v714 = vmax.f32 %v712, %v713
        %v715 = vrot.slane %v714, 2
        %v716 = vmax.f32 %v714, %v715
        %v717 = vrot.slane %v716, 1
        %v718 = vmax.f32 %v716, %v717
        %v719 = vsel %vm669, %v644, -inf
        %v720 = vrot.slane %v719, 4
        %v721 = vmax.f32 %v719, %v720
        %v722 = vrot.slane %v721, 2
        %v723 = vmax.f32 %v721, %v722
        %v724 = vrot.slane %v723, 1
        %v725 = vmax.f32 %v723, %v724
        %v726 = vsel %vm669, %v645, -inf
        %v727 = vrot.slane %v726, 4
        %v728 = vmax.f32 %v726, %v727
        %v729 = vrot.slane %v728, 2
        %v730 = vmax.f32 %v728, %v729
        %v731 = vrot.slane %v730, 1
        %v732 = vmax.f32 %v730, %v731
        %v733 = vsel %vm669, %v646, -inf
        %v734 = vrot.slane %v733, 4
        %v735 = vmax.f32 %v733, %v734
        %v736 = vrot.slane %v735, 2
        %v737 = vmax.f32 %v735, %v736
        %v738 = vrot.slane %v737, 1
        %v739 = vmax.f32 %v737, %v738
        %v740 = vsel %vm669, %v647, -inf
        %v741 = vrot.slane %v740, 4
        %v742 = vmax.f32 %v740, %v741
        %v743 = vrot.slane %v742, 2
        %v744 = vmax.f32 %v742, %v743
        %v745 = vrot.slane %v744, 1
        %v746 = vmax.f32 %v744, %v745
        %v747 = vsel %vm669, %v648, -inf
        %v748 = vrot.slane %v747, 4
        %v749 = vmax.f32 %v747, %v748
        %v750 = vrot.slane %v749, 2
        %v751 = vmax.f32 %v749, %v750
        %v752 = vrot.slane %v751, 1
        %v753 = vmax.f32 %v751, %v752
        %v754 = vsel %vm669, %v649, -inf
        %v755 = vrot.slane %v754, 4
        %v756 = vmax.f32 %v754, %v755
        %v757 = vrot.slane %v756, 2
        %v758 = vmax.f32 %v756, %v757
        %v759 = vrot.slane %v758, 1
        %v760 = vmax.f32 %v758, %v759
        %v761 = vsel %vm669, %v650, -inf
        %v762 = vrot.slane %v761, 4
        %v763 = vmax.f32 %v761, %v762
        %v764 = vrot.slane %v763, 2
        %v765 = vmax.f32 %v763, %v764
        %v766 = vrot.slane %v765, 1
        %v767 = vmax.f32 %v765, %v766
        %v768 = vsel %vm669, %v651, -inf
        %v769 = vrot.slane %v768, 4
        %v770 = vmax.f32 %v768, %v769
        %v771 = vrot.slane %v770, 2
        %v772 = vmax.f32 %v770, %v771
        %v773 = vrot.slane %v772, 1
        %v774 = vmax.f32 %v772, %v773
        %v775 = vsel %vm669, %v652, -inf
        %v776 = vrot.slane %v775, 4
        %v777 = vmax.f32 %v775, %v776
        %v778 = vrot.slane %v777, 2
        %v779 = vmax.f32 %v777, %v778
        %v780 = vrot.slane %v779, 1
        %v781 = vmax.f32 %v779, %v780
        %v782 = vsel %vm669, %v653, -inf
        %v783 = vrot.slane %v782, 4
        %v784 = vmax.f32 %v782, %v783
        %v785 = vrot.slane %v784, 2
        %v786 = vmax.f32 %v784, %v785
        %v787 = vrot.slane %v786, 1
        %v788 = vmax.f32 %v786, %v787
        %v789 = vsel %vm669, %v654, -inf
        %v790 = vrot.slane %v789, 4
        %v791 = vmax.f32 %v789, %v790
        %v792 = vrot.slane %v791, 2
        %v793 = vmax.f32 %v791, %v792
        %v794 = vrot.slane %v793, 1
        %v795 = vmax.f32 %v793, %v794
        %v796 = vsel %vm669, %v655, -inf
        %v797 = vrot.slane %v796, 4
        %v798 = vmax.f32 %v796, %v797
        %v799 = vrot.slane %v798, 2
        %v800 = vmax.f32 %v798, %v799
        %v801 = vrot.slane %v800, 1
        %v802 = vmax.f32 %v800, %v801
        %v803 = vsel %vm669, %v656, -inf
        %v804 = vrot.slane %v803, 4
        %v805 = vmax.f32 %v803, %v804
        %v806 = vrot.slane %v805, 2
        %v807 = vmax.f32 %v805, %v806
        %v808 = vrot.slane %v807, 1
        %v809 = vmax.f32 %v807, %v808
        %v810 = vsel %vm669, %v657, -inf
        %v811 = vrot.slane %v810, 4
        %v812 = vmax.f32 %v810, %v811
        %v813 = vrot.slane %v812, 2
        %v814 = vmax.f32 %v812, %v813
        %v815 = vrot.slane %v814, 1
        %v816 = vmax.f32 %v814, %v815
        %v817 = vsel %vm669, %v658, -inf
        %v818 = vrot.slane %v817, 4
        %v819 = vmax.f32 %v817, %v818
        %v820 = vrot.slane %v819, 2
        %v821 = vmax.f32 %v819, %v820
        %v822 = vrot.slane %v821, 1
        %v823 = vmax.f32 %v821, %v822
        %v824 = vsel %vm669, %v659, -inf
        %v825 = vrot.slane %v824, 4
        %v826 = vmax.f32 %v824, %v825
        %v827 = vrot.slane %v826, 2
        %v828 = vmax.f32 %v826, %v827
        %v829 = vrot.slane %v828, 1
        %v830 = vmax.f32 %v828, %v829
        %v831 = vsel %vm669, %v660, -inf
        %v832 = vrot.slane %v831, 4
        %v833 = vmax.f32 %v831, %v832
        %v834 = vrot.slane %v833, 2
        %v835 = vmax.f32 %v833, %v834
        %v836 = vrot.slane %v835, 1
        %v837 = vmax.f32 %v835, %v836
        %v838 = vsel %vm669, %v661, -inf
        %v839 = vrot.slane %v838, 4
        %v840 = vmax.f32 %v838, %v839
        %v841 = vrot.slane %v840, 2
        %v842 = vmax.f32 %v840, %v841
        %v843 = vrot.slane %v842, 1
        %v844 = vmax.f32 %v842, %v843
        %v845 = vsel %vm669, %v662, -inf
        %v846 = vrot.slane %v845, 4
        %v847 = vmax.f32 %v845, %v846
        %v848 = vrot.slane %v847, 2
        %v849 = vmax.f32 %v847, %v848
        %v850 = vrot.slane %v849, 1
        %v851 = vmax.f32 %v849, %v850
        %v852 = vsel %vm669, %v663, -inf
        %v853 = vrot.slane %v852, 4
        %v854 = vmax.f32 %v852, %v853
        %v855 = vrot.slane %v854, 2
        %v856 = vmax.f32 %v854, %v855
        %v857 = vrot.slane %v856, 1
        %v858 = vmax.f32 %v856, %v857
        %v859 = vsel %vm669, %v664, -inf
        %v860 = vrot.slane %v859, 4
        %v861 = vmax.f32 %v859, %v860
        %v862 = vrot.slane %v861, 2
        %v863 = vmax.f32 %v861, %v862
        %v864 = vrot.slane %v863, 1
        %v865 = vmax.f32 %v863, %v864
        %v866 = vsel %vm669, %v665, -inf
        %v867 = vrot.slane %v866, 4
        %v868 = vmax.f32 %v866, %v867
        %v869 = vrot.slane %v868, 2
        %v870 = vmax.f32 %v868, %v869
        %v871 = vrot.slane %v870, 1
        %v872 = vmax.f32 %v870, %v871
        %v873 = vsel %vm669, %v666, -inf
        %v874 = vrot.slane %v873, 4
        %v875 = vmax.f32 %v873, %v874
        %v876 = vrot.slane %v875, 2
        %v877 = vmax.f32 %v875, %v876
        %v878 = vrot.slane %v877, 1
        %v879 = vmax.f32 %v877, %v878
        %v880 = vsel %vm669, %v667, -inf
        %v881 = vrot.slane %v880, 4
        %v882 = vmax.f32 %v880, %v881
        %v883 = vrot.slane %v882, 2
        %v884 = vmax.f32 %v882, %v883
        %v885 = vrot.slane %v884, 1
        %v886 = vmax.f32 %v884, %v885
        %v887 = vsel %vm669, %v668, -inf
        %v888 = vrot.slane %v887, 4
        %v889 = vmax.f32 %v887, %v888
        %v890 = vrot.slane %v889, 2
        %v891 = vmax.f32 %v889, %v890
        %v892 = vrot.slane %v891, 1
        %v893 = vmax.f32 %v891, %v892
        %926 = vrot.lane.b32.xlu0 %v676, 32
        %v927 = vpop.permute.xlu0 %926
        %928 = vrot.lane.b32.xlu0 %v683, 32
        %v929 = vpop.permute.xlu0 %928
        %930 = vrot.lane.b32.xlu0 %v690, 32
        %v931 = vpop.permute.xlu0 %930
        %932 = vrot.lane.b32.xlu0 %v697, 32
        %v933 = vpop.permute.xlu0 %932
        %934 = vrot.lane.b32.xlu0 %v704, 32
        %v935 = vpop.permute.xlu0 %934
        %936 = vrot.lane.b32.xlu0 %v711, 32
        %v937 = vpop.permute.xlu0 %936
        %938 = vrot.lane.b32.xlu0 %v718, 32
        %v939 = vpop.permute.xlu0 %938
        %940 = vrot.lane.b32.xlu0 %v725, 32
        %v941 = vpop.permute.xlu0 %940
        %942 = vrot.lane.b32.xlu0 %v732, 32
        %v943 = vpop.permute.xlu0 %942
        %944 = vrot.lane.b32.xlu0 %v739, 32
        %v945 = vpop.permute.xlu0 %944
        %946 = vrot.lane.b32.xlu0 %v746, 32
        %v947 = vpop.permute.xlu0 %946
        %948 = vrot.lane.b32.xlu0 %v753, 32
        %v949 = vpop.permute.xlu0 %948
        %950 = vrot.lane.b32.xlu0 %v760, 32
        %v951 = vpop.permute.xlu0 %950
        %952 = vrot.lane.b32.xlu0 %v767, 32
        %v953 = vpop.permute.xlu0 %952
        %954 = vrot.lane.b32.xlu0 %v774, 32
        %v955 = vpop.permute.xlu0 %954
        %956 = vrot.lane.b32.xlu0 %v781, 32
        %v957 = vpop.permute.xlu0 %956
        %958 = vrot.lane.b32.xlu0 %v788, 32
        %v959 = vpop.permute.xlu0 %958
        %960 = vrot.lane.b32.xlu0 %v795, 32
        %v961 = vpop.permute.xlu0 %960
        %962 = vrot.lane.b32.xlu0 %v802, 32
        %v963 = vpop.permute.xlu0 %962
        %964 = vrot.lane.b32.xlu0 %v809, 32
        %v965 = vpop.permute.xlu0 %964
        %966 = vrot.lane.b32.xlu0 %v816, 32
        %v967 = vpop.permute.xlu0 %966
        %968 = vrot.lane.b32.xlu0 %v823, 32
        %v969 = vpop.permute.xlu0 %968
        %970 = vrot.lane.b32.xlu0 %v830, 32
        %v971 = vpop.permute.xlu0 %970
        %972 = vrot.lane.b32.xlu0 %v837, 32
        %v973 = vpop.permute.xlu0 %972
        %974 = vrot.lane.b32.xlu0 %v844, 32
        %v975 = vpop.permute.xlu0 %974
        %976 = vrot.lane.b32.xlu0 %v851, 32
        %v977 = vpop.permute.xlu0 %976
        %978 = vrot.lane.b32.xlu0 %v858, 32
        %v979 = vpop.permute.xlu0 %978
        %980 = vrot.lane.b32.xlu0 %v865, 32
        %v981 = vpop.permute.xlu0 %980
        %982 = vrot.lane.b32.xlu0 %v872, 32
        %v983 = vpop.permute.xlu0 %982
        %984 = vrot.lane.b32.xlu0 %v879, 32
        %v985 = vpop.permute.xlu0 %984
        %986 = vrot.lane.b32.xlu0 %v886, 32
        %v987 = vpop.permute.xlu0 %986
        %988 = vrot.lane.b32.xlu0 %v893, 32
        %v989 = vpop.permute.xlu0 %988
        %v1022 = vsel %vm669, %v637, %v927
        %v1023 = vsel %vm669, %v638, %v929
        %v1024 = vsel %vm669, %v639, %v931
        %v1025 = vsel %vm669, %v640, %v933
        %v1026 = vsel %vm669, %v641, %v935
        %v1027 = vsel %vm669, %v642, %v937
        %v1028 = vsel %vm669, %v643, %v939
        %v1029 = vsel %vm669, %v644, %v941
        %v1030 = vsel %vm669, %v645, %v943
        %v1031 = vsel %vm669, %v646, %v945
        %v1032 = vsel %vm669, %v647, %v947
        %v1033 = vsel %vm669, %v648, %v949
        %v1034 = vsel %vm669, %v649, %v951
        %v1035 = vsel %vm669, %v650, %v953
        %v1036 = vsel %vm669, %v651, %v955
        %v1037 = vsel %vm669, %v652, %v957
        %v1038 = vsel %vm669, %v653, %v959
        %v1039 = vsel %vm669, %v654, %v961
        %v1040 = vsel %vm669, %v655, %v963
        %v1041 = vsel %vm669, %v656, %v965
        %v1042 = vsel %vm669, %v657, %v967
        %v1043 = vsel %vm669, %v658, %v969
        %v1044 = vsel %vm669, %v659, %v971
        %v1045 = vsel %vm669, %v660, %v973
        %v1046 = vsel %vm669, %v661, %v975
        %v1047 = vsel %vm669, %v662, %v977
        %v1048 = vsel %vm669, %v663, %v979
        %v1049 = vsel %vm669, %v664, %v981
        %v1050 = vsel %vm669, %v665, %v983
        %v1051 = vsel %vm669, %v666, %v985
        %v1052 = vsel %vm669, %v667, %v987
        %v1053 = vsel %vm669, %v668, %v989
        %v1054 = vcombine.low %v1022, %v1024
        %v1055 = vcombine.high %v1022, %v1024
        %v1057 = vunpack.c.l.s4 1983009808
        %v1058 = vunpack.c.0.s8 %v1057
        %v1059 = vlaneseq
        %v1060 = vshrl.u32 %v1059, 7
        %v1061 = vsub.s32 %v1058, %v1060
        %v1062 = vrot.slane %v1054, %v1061
        %v1064 = vunpack.c.l.s4 1983009808
        %v1065 = vunpack.c.0.s8 %v1064
        %v1066 = vlaneseq
        %v1067 = vshrl.u32 %v1066, 7
        %v1068 = vsub.s32 %v1065, %v1067
        %v1069 = vrot.slane %v1055, %v1068
        %v1070 = vcombine.low %v1023, %v1025
        %v1071 = vcombine.high %v1023, %v1025
        %v1073 = vunpack.c.l.s4 1983009808
        %v1074 = vunpack.c.0.s8 %v1073
        %v1075 = vlaneseq
        %v1076 = vshrl.u32 %v1075, 7
        %v1077 = vsub.s32 %v1074, %v1076
        %v1078 = vrot.slane %v1070, %v1077
        %v1080 = vunpack.c.l.s4 1983009808
        %v1081 = vunpack.c.0.s8 %v1080
        %v1082 = vlaneseq
        %v1083 = vshrl.u32 %v1082, 7
        %v1084 = vsub.s32 %v1081, %v1083
        %v1085 = vrot.slane %v1071, %v1084
        %v1086 = vcombine.low %v1026, %v1028
        %v1087 = vcombine.high %v1026, %v1028
        %v1089 = vunpack.c.l.s4 1983009808
        %v1090 = vunpack.c.0.s8 %v1089
        %v1091 = vlaneseq
        %v1092 = vshrl.u32 %v1091, 7
        %v1093 = vsub.s32 %v1090, %v1092
        %v1094 = vrot.slane %v1086, %v1093
        %v1096 = vunpack.c.l.s4 1983009808
        %v1097 = vunpack.c.0.s8 %v1096
        %v1098 = vlaneseq
        %v1099 = vshrl.u32 %v1098, 7
        %v1100 = vsub.s32 %v1097, %v1099
        %v1101 = vrot.slane %v1087, %v1100
        %v1102 = vcombine.low %v1027, %v1029
        %v1103 = vcombine.high %v1027, %v1029
        %v1105 = vunpack.c.l.s4 1983009808
        %v1106 = vunpack.c.0.s8 %v1105
        %v1107 = vlaneseq
        %v1108 = vshrl.u32 %v1107, 7
        %v1109 = vsub.s32 %v1106, %v1108
        %v1110 = vrot.slane %v1102, %v1109
        %v1112 = vunpack.c.l.s4 1983009808
        %v1113 = vunpack.c.0.s8 %v1112
        %v1114 = vlaneseq
        %v1115 = vshrl.u32 %v1114, 7
        %v1116 = vsub.s32 %v1113, %v1115
        %v1117 = vrot.slane %v1103, %v1116
        %v1118 = vcombine.low %v1062, %v1078
        %v1119 = vcombine.high %v1062, %v1078
        %v1121 = vunpack.c.l.s4 1934713408
        %v1122 = vunpack.c.0.s8 %v1121
        %v1123 = vlaneseq
        %v1124 = vshrl.u32 %v1123, 7
        %v1125 = vsub.s32 %v1122, %v1124
        %v1126 = vrot.slane %v1118, %v1125
        %v1128 = vunpack.c.l.s4 1934713408
        %v1129 = vunpack.c.0.s8 %v1128
        %v1130 = vlaneseq
        %v1131 = vshrl.u32 %v1130, 7
        %v1132 = vsub.s32 %v1129, %v1131
        %v1133 = vrot.slane %v1119, %v1132
        %v1134 = vcombine.low %v1069, %v1085
        %v1135 = vcombine.high %v1069, %v1085
        %v1137 = vunpack.c.l.s4 1934713408
        %v1138 = vunpack.c.0.s8 %v1137
        %v1139 = vlaneseq
        %v1140 = vshrl.u32 %v1139, 7
        %v1141 = vsub.s32 %v1138, %v1140
        %v1142 = vrot.slane %v1134, %v1141
        %v1144 = vunpack.c.l.s4 1934713408
        %v1145 = vunpack.c.0.s8 %v1144
        %v1146 = vlaneseq
        %v1147 = vshrl.u32 %v1146, 7
        %v1148 = vsub.s32 %v1145, %v1147
        %v1149 = vrot.slane %v1135, %v1148
        %v1150 = vcombine.low %v1094, %v1110
        %v1151 = vcombine.high %v1094, %v1110
        %v1153 = vunpack.c.l.s4 1934713408
        %v1154 = vunpack.c.0.s8 %v1153
        %v1155 = vlaneseq
        %v1156 = vshrl.u32 %v1155, 7
        %v1157 = vsub.s32 %v1154, %v1156
        %v1158 = vrot.slane %v1150, %v1157
        %v1160 = vunpack.c.l.s4 1934713408
        %v1161 = vunpack.c.0.s8 %v1160
        %v1162 = vlaneseq
        %v1163 = vshrl.u32 %v1162, 7
        %v1164 = vsub.s32 %v1161, %v1163
        %v1165 = vrot.slane %v1151, %v1164
        %v1166 = vcombine.low %v1101, %v1117
        %v1167 = vcombine.high %v1101, %v1117
        %v1169 = vunpack.c.l.s4 1934713408
        %v1170 = vunpack.c.0.s8 %v1169
        %v1171 = vlaneseq
        %v1172 = vshrl.u32 %v1171, 7
        %v1173 = vsub.s32 %v1170, %v1172
        %v1174 = vrot.slane %v1166, %v1173
        %v1176 = vunpack.c.l.s4 1934713408
        %v1177 = vunpack.c.0.s8 %v1176
        %v1178 = vlaneseq
        %v1179 = vshrl.u32 %v1178, 7
        %v1180 = vsub.s32 %v1177, %v1179
        %v1181 = vrot.slane %v1167, %v1180
        %v1182 = vcombine.low %v1126, %v1158
        %v1183 = vcombine.high %v1126, %v1158
        %v1184 = vcombine.low %v1133, %v1165
        %v1185 = vcombine.high %v1133, %v1165
        %v1186 = vcombine.low %v1142, %v1174
        %v1187 = vcombine.high %v1142, %v1174
        %v1188 = vcombine.low %v1149, %v1181
        %v1189 = vcombine.high %v1149, %v1181
        %v1190 = vcombine.low %v1030, %v1032
        %v1191 = vcombine.high %v1030, %v1032
        %v1193 = vunpack.c.l.s4 1983009808
        %v1194 = vunpack.c.0.s8 %v1193
        %v1195 = vlaneseq
        %v1196 = vshrl.u32 %v1195, 7
        %v1197 = vsub.s32 %v1194, %v1196
        %v1198 = vrot.slane %v1190, %v1197
        %v1200 = vunpack.c.l.s4 1983009808
        %v1201 = vunpack.c.0.s8 %v1200
        %v1202 = vlaneseq
        %v1203 = vshrl.u32 %v1202, 7
        %v1204 = vsub.s32 %v1201, %v1203
        %v1205 = vrot.slane %v1191, %v1204
        %v1206 = vcombine.low %v1031, %v1033
        %v1207 = vcombine.high %v1031, %v1033
        %v1209 = vunpack.c.l.s4 1983009808
        %v1210 = vunpack.c.0.s8 %v1209
        %v1211 = vlaneseq
        %v1212 = vshrl.u32 %v1211, 7
        %v1213 = vsub.s32 %v1210, %v1212
        %v1214 = vrot.slane %v1206, %v1213
        %v1216 = vunpack.c.l.s4 1983009808
        %v1217 = vunpack.c.0.s8 %v1216
        %v1218 = vlaneseq
        %v1219 = vshrl.u32 %v1218, 7
        %v1220 = vsub.s32 %v1217, %v1219
        %v1221 = vrot.slane %v1207, %v1220
        %v1222 = vcombine.low %v1034, %v1036
        %v1223 = vcombine.high %v1034, %v1036
        %v1225 = vunpack.c.l.s4 1983009808
        %v1226 = vunpack.c.0.s8 %v1225
        %v1227 = vlaneseq
        %v1228 = vshrl.u32 %v1227, 7
        %v1229 = vsub.s32 %v1226, %v1228
        %v1230 = vrot.slane %v1222, %v1229
        %v1232 = vunpack.c.l.s4 1983009808
        %v1233 = vunpack.c.0.s8 %v1232
        %v1234 = vlaneseq
        %v1235 = vshrl.u32 %v1234, 7
        %v1236 = vsub.s32 %v1233, %v1235
        %v1237 = vrot.slane %v1223, %v1236
        %v1238 = vcombine.low %v1035, %v1037
        %v1239 = vcombine.high %v1035, %v1037
        %v1241 = vunpack.c.l.s4 1983009808
        %v1242 = vunpack.c.0.s8 %v1241
        %v1243 = vlaneseq
        %v1244 = vshrl.u32 %v1243, 7
        %v1245 = vsub.s32 %v1242, %v1244
        %v1246 = vrot.slane %v1238, %v1245
        %v1248 = vunpack.c.l.s4 1983009808
        %v1249 = vunpack.c.0.s8 %v1248
        %v1250 = vlaneseq
        %v1251 = vshrl.u32 %v1250, 7
        %v1252 = vsub.s32 %v1249, %v1251
        %v1253 = vrot.slane %v1239, %v1252
        %v1254 = vcombine.low %v1198, %v1214
        %v1255 = vcombine.high %v1198, %v1214
        %v1257 = vunpack.c.l.s4 1934713408
        %v1258 = vunpack.c.0.s8 %v1257
        %v1259 = vlaneseq
        %v1260 = vshrl.u32 %v1259, 7
        %v1261 = vsub.s32 %v1258, %v1260
        %v1262 = vrot.slane %v1254, %v1261
        %v1264 = vunpack.c.l.s4 1934713408
        %v1265 = vunpack.c.0.s8 %v1264
        %v1266 = vlaneseq
        %v1267 = vshrl.u32 %v1266, 7
        %v1268 = vsub.s32 %v1265, %v1267
        %v1269 = vrot.slane %v1255, %v1268
        %v1270 = vcombine.low %v1205, %v1221
        %v1271 = vcombine.high %v1205, %v1221
        %v1273 = vunpack.c.l.s4 1934713408
        %v1274 = vunpack.c.0.s8 %v1273
        %v1275 = vlaneseq
        %v1276 = vshrl.u32 %v1275, 7
        %v1277 = vsub.s32 %v1274, %v1276
        %v1278 = vrot.slane %v1270, %v1277
        %v1280 = vunpack.c.l.s4 1934713408
        %v1281 = vunpack.c.0.s8 %v1280
        %v1282 = vlaneseq
        %v1283 = vshrl.u32 %v1282, 7
        %v1284 = vsub.s32 %v1281, %v1283
        %v1285 = vrot.slane %v1271, %v1284
        %v1286 = vcombine.low %v1230, %v1246
        %v1287 = vcombine.high %v1230, %v1246
        %v1289 = vunpack.c.l.s4 1934713408
        %v1290 = vunpack.c.0.s8 %v1289
        %v1291 = vlaneseq
        %v1292 = vshrl.u32 %v1291, 7
        %v1293 = vsub.s32 %v1290, %v1292
        %v1294 = vrot.slane %v1286, %v1293
        %v1296 = vunpack.c.l.s4 1934713408
        %v1297 = vunpack.c.0.s8 %v1296
        %v1298 = vlaneseq
        %v1299 = vshrl.u32 %v1298, 7
        %v1300 = vsub.s32 %v1297, %v1299
        %v1301 = vrot.slane %v1287, %v1300
        %v1302 = vcombine.low %v1237, %v1253
        %v1303 = vcombine.high %v1237, %v1253
        %v1305 = vunpack.c.l.s4 1934713408
        %v1306 = vunpack.c.0.s8 %v1305
        %v1307 = vlaneseq
        %v1308 = vshrl.u32 %v1307, 7
        %v1309 = vsub.s32 %v1306, %v1308
        %v1310 = vrot.slane %v1302, %v1309
        %v1312 = vunpack.c.l.s4 1934713408
        %v1313 = vunpack.c.0.s8 %v1312
        %v1314 = vlaneseq
        %v1315 = vshrl.u32 %v1314, 7
        %v1316 = vsub.s32 %v1313, %v1315
        %v1317 = vrot.slane %v1303, %v1316
        %v1318 = vcombine.low %v1262, %v1294
        %v1319 = vcombine.high %v1262, %v1294
        %v1320 = vcombine.low %v1269, %v1301
        %v1321 = vcombine.high %v1269, %v1301
        %v1322 = vcombine.low %v1278, %v1310
        %v1323 = vcombine.high %v1278, %v1310
        %v1324 = vcombine.low %v1285, %v1317
        %v1325 = vcombine.high %v1285, %v1317
        %v1326 = vcombine.low %v1038, %v1040
        %v1327 = vcombine.high %v1038, %v1040
        %v1329 = vunpack.c.l.s4 1983009808
        %v1330 = vunpack.c.0.s8 %v1329
        %v1331 = vlaneseq
        %v1332 = vshrl.u32 %v1331, 7
        %v1333 = vsub.s32 %v1330, %v1332
        %v1334 = vrot.slane %v1326, %v1333
        %v1336 = vunpack.c.l.s4 1983009808
        %v1337 = vunpack.c.0.s8 %v1336
        %v1338 = vlaneseq
        %v1339 = vshrl.u32 %v1338, 7
        %v1340 = vsub.s32 %v1337, %v1339
        %v1341 = vrot.slane %v1327, %v1340
        %v1342 = vcombine.low %v1039, %v1041
        %v1343 = vcombine.high %v1039, %v1041
        %v1345 = vunpack.c.l.s4 1983009808
        %v1346 = vunpack.c.0.s8 %v1345
        %v1347 = vlaneseq
        %v1348 = vshrl.u32 %v1347, 7
        %v1349 = vsub.s32 %v1346, %v1348
        %v1350 = vrot.slane %v1342, %v1349
        %v1352 = vunpack.c.l.s4 1983009808
        %v1353 = vunpack.c.0.s8 %v1352
        %v1354 = vlaneseq
        %v1355 = vshrl.u32 %v1354, 7
        %v1356 = vsub.s32 %v1353, %v1355
        %v1357 = vrot.slane %v1343, %v1356
        %v1358 = vcombine.low %v1042, %v1044
        %v1359 = vcombine.high %v1042, %v1044
        %v1361 = vunpack.c.l.s4 1983009808
        %v1362 = vunpack.c.0.s8 %v1361
        %v1363 = vlaneseq
        %v1364 = vshrl.u32 %v1363, 7
        %v1365 = vsub.s32 %v1362, %v1364
        %v1366 = vrot.slane %v1358, %v1365
        %v1368 = vunpack.c.l.s4 1983009808
        %v1369 = vunpack.c.0.s8 %v1368
        %v1370 = vlaneseq
        %v1371 = vshrl.u32 %v1370, 7
        %v1372 = vsub.s32 %v1369, %v1371
        %v1373 = vrot.slane %v1359, %v1372
        %v1374 = vcombine.low %v1043, %v1045
        %v1375 = vcombine.high %v1043, %v1045
        %v1377 = vunpack.c.l.s4 1983009808
        %v1378 = vunpack.c.0.s8 %v1377
        %v1379 = vlaneseq
        %v1380 = vshrl.u32 %v1379, 7
        %v1381 = vsub.s32 %v1378, %v1380
        %v1382 = vrot.slane %v1374, %v1381
        %v1384 = vunpack.c.l.s4 1983009808
        %v1385 = vunpack.c.0.s8 %v1384
        %v1386 = vlaneseq
        %v1387 = vshrl.u32 %v1386, 7
        %v1388 = vsub.s32 %v1385, %v1387
        %v1389 = vrot.slane %v1375, %v1388
        %v1390 = vcombine.low %v1334, %v1350
        %v1391 = vcombine.high %v1334, %v1350
        %v1393 = vunpack.c.l.s4 1934713408
        %v1394 = vunpack.c.0.s8 %v1393
        %v1395 = vlaneseq
        %v1396 = vshrl.u32 %v1395, 7
        %v1397 = vsub.s32 %v1394, %v1396
        %v1398 = vrot.slane %v1390, %v1397
        %v1400 = vunpack.c.l.s4 1934713408
        %v1401 = vunpack.c.0.s8 %v1400
        %v1402 = vlaneseq
        %v1403 = vshrl.u32 %v1402, 7
        %v1404 = vsub.s32 %v1401, %v1403
        %v1405 = vrot.slane %v1391, %v1404
        %v1406 = vcombine.low %v1341, %v1357
        %v1407 = vcombine.high %v1341, %v1357
        %v1409 = vunpack.c.l.s4 1934713408
        %v1410 = vunpack.c.0.s8 %v1409
        %v1411 = vlaneseq
        %v1412 = vshrl.u32 %v1411, 7
        %v1413 = vsub.s32 %v1410, %v1412
        %v1414 = vrot.slane %v1406, %v1413
        %v1416 = vunpack.c.l.s4 1934713408
        %v1417 = vunpack.c.0.s8 %v1416
        %v1418 = vlaneseq
        %v1419 = vshrl.u32 %v1418, 7
        %v1420 = vsub.s32 %v1417, %v1419
        %v1421 = vrot.slane %v1407, %v1420
        %v1422 = vcombine.low %v1366, %v1382
        %v1423 = vcombine.high %v1366, %v1382
        %v1425 = vunpack.c.l.s4 1934713408
        %v1426 = vunpack.c.0.s8 %v1425
        %v1427 = vlaneseq
        %v1428 = vshrl.u32 %v1427, 7
        %v1429 = vsub.s32 %v1426, %v1428
        %v1430 = vrot.slane %v1422, %v1429
        %v1432 = vunpack.c.l.s4 1934713408
        %v1433 = vunpack.c.0.s8 %v1432
        %v1434 = vlaneseq
        %v1435 = vshrl.u32 %v1434, 7
        %v1436 = vsub.s32 %v1433, %v1435
        %v1437 = vrot.slane %v1423, %v1436
        %v1438 = vcombine.low %v1373, %v1389
        %v1439 = vcombine.high %v1373, %v1389
        %v1441 = vunpack.c.l.s4 1934713408
        %v1442 = vunpack.c.0.s8 %v1441
        %v1443 = vlaneseq
        %v1444 = vshrl.u32 %v1443, 7
        %v1445 = vsub.s32 %v1442, %v1444
        %v1446 = vrot.slane %v1438, %v1445
        %v1448 = vunpack.c.l.s4 1934713408
        %v1449 = vunpack.c.0.s8 %v1448
        %v1450 = vlaneseq
        %v1451 = vshrl.u32 %v1450, 7
        %v1452 = vsub.s32 %v1449, %v1451
        %v1453 = vrot.slane %v1439, %v1452
        %v1454 = vcombine.low %v1398, %v1430
        %v1455 = vcombine.high %v1398, %v1430
        %v1456 = vcombine.low %v1405, %v1437
        %v1457 = vcombine.high %v1405, %v1437
        %v1458 = vcombine.low %v1414, %v1446
        %v1459 = vcombine.high %v1414, %v1446
        %v1460 = vcombine.low %v1421, %v1453
        %v1461 = vcombine.high %v1421, %v1453
        %v1462 = vcombine.low %v1046, %v1048
        %v1463 = vcombine.high %v1046, %v1048
        %v1465 = vunpack.c.l.s4 1983009808
        %v1466 = vunpack.c.0.s8 %v1465
        %v1467 = vlaneseq
        %v1468 = vshrl.u32 %v1467, 7
        %v1469 = vsub.s32 %v1466, %v1468
        %v1470 = vrot.slane %v1462, %v1469
        %v1472 = vunpack.c.l.s4 1983009808
        %v1473 = vunpack.c.0.s8 %v1472
        %v1474 = vlaneseq
        %v1475 = vshrl.u32 %v1474, 7
        %v1476 = vsub.s32 %v1473, %v1475
        %v1477 = vrot.slane %v1463, %v1476
        %v1478 = vcombine.low %v1047, %v1049
        %v1479 = vcombine.high %v1047, %v1049
        %v1481 = vunpack.c.l.s4 1983009808
        %v1482 = vunpack.c.0.s8 %v1481
        %v1483 = vlaneseq
        %v1484 = vshrl.u32 %v1483, 7
        %v1485 = vsub.s32 %v1482, %v1484
        %v1486 = vrot.slane %v1478, %v1485
        %v1488 = vunpack.c.l.s4 1983009808
        %v1489 = vunpack.c.0.s8 %v1488
        %v1490 = vlaneseq
        %v1491 = vshrl.u32 %v1490, 7
        %v1492 = vsub.s32 %v1489, %v1491
        %v1493 = vrot.slane %v1479, %v1492
        %v1494 = vcombine.low %v1050, %v1052
        %v1495 = vcombine.high %v1050, %v1052
        %v1497 = vunpack.c.l.s4 1983009808
        %v1498 = vunpack.c.0.s8 %v1497
        %v1499 = vlaneseq
        %v1500 = vshrl.u32 %v1499, 7
        %v1501 = vsub.s32 %v1498, %v1500
        %v1502 = vrot.slane %v1494, %v1501
        %v1504 = vunpack.c.l.s4 1983009808
        %v1505 = vunpack.c.0.s8 %v1504
        %v1506 = vlaneseq
        %v1507 = vshrl.u32 %v1506, 7
        %v1508 = vsub.s32 %v1505, %v1507
        %v1509 = vrot.slane %v1495, %v1508
        %v1510 = vcombine.low %v1051, %v1053
        %v1511 = vcombine.high %v1051, %v1053
        %v1513 = vunpack.c.l.s4 1983009808
        %v1514 = vunpack.c.0.s8 %v1513
        %v1515 = vlaneseq
        %v1516 = vshrl.u32 %v1515, 7
        %v1517 = vsub.s32 %v1514, %v1516
        %v1518 = vrot.slane %v1510, %v1517
        %v1520 = vunpack.c.l.s4 1983009808
        %v1521 = vunpack.c.0.s8 %v1520
        %v1522 = vlaneseq
        %v1523 = vshrl.u32 %v1522, 7
        %v1524 = vsub.s32 %v1521, %v1523
        %v1525 = vrot.slane %v1511, %v1524
        %v1526 = vcombine.low %v1470, %v1486
        %v1527 = vcombine.high %v1470, %v1486
        %v1529 = vunpack.c.l.s4 1934713408
        %v1530 = vunpack.c.0.s8 %v1529
        %v1531 = vlaneseq
        %v1532 = vshrl.u32 %v1531, 7
        %v1533 = vsub.s32 %v1530, %v1532
        %v1534 = vrot.slane %v1526, %v1533
        %v1536 = vunpack.c.l.s4 1934713408
        %v1537 = vunpack.c.0.s8 %v1536
        %v1538 = vlaneseq
        %v1539 = vshrl.u32 %v1538, 7
        %v1540 = vsub.s32 %v1537, %v1539
        %v1541 = vrot.slane %v1527, %v1540
        %v1542 = vcombine.low %v1477, %v1493
        %v1543 = vcombine.high %v1477, %v1493
        %v1545 = vunpack.c.l.s4 1934713408
        %v1546 = vunpack.c.0.s8 %v1545
        %v1547 = vlaneseq
        %v1548 = vshrl.u32 %v1547, 7
        %v1549 = vsub.s32 %v1546, %v1548
        %v1550 = vrot.slane %v1542, %v1549
        %v1552 = vunpack.c.l.s4 1934713408
        %v1553 = vunpack.c.0.s8 %v1552
        %v1554 = vlaneseq
        %v1555 = vshrl.u32 %v1554, 7
        %v1556 = vsub.s32 %v1553, %v1555
        %v1557 = vrot.slane %v1543, %v1556
        %v1558 = vcombine.low %v1502, %v1518
        %v1559 = vcombine.high %v1502, %v1518
        %v1561 = vunpack.c.l.s4 1934713408
        %v1562 = vunpack.c.0.s8 %v1561
        %v1563 = vlaneseq
        %v1564 = vshrl.u32 %v1563, 7
        %v1565 = vsub.s32 %v1562, %v1564
        %v1566 = vrot.slane %v1558, %v1565
        %v1568 = vunpack.c.l.s4 1934713408
        %v1569 = vunpack.c.0.s8 %v1568
        %v1570 = vlaneseq
        %v1571 = vshrl.u32 %v1570, 7
        %v1572 = vsub.s32 %v1569, %v1571
        %v1573 = vrot.slane %v1559, %v1572
        %v1574 = vcombine.low %v1509, %v1525
        %v1575 = vcombine.high %v1509, %v1525
        %v1577 = vunpack.c.l.s4 1934713408
        %v1578 = vunpack.c.0.s8 %v1577
        %v1579 = vlaneseq
        %v1580 = vshrl.u32 %v1579, 7
        %v1581 = vsub.s32 %v1578, %v1580
        %v1582 = vrot.slane %v1574, %v1581
        %v1584 = vunpack.c.l.s4 1934713408
        %v1585 = vunpack.c.0.s8 %v1584
        %v1586 = vlaneseq
        %v1587 = vshrl.u32 %v1586, 7
        %v1588 = vsub.s32 %v1585, %v1587
        %v1589 = vrot.slane %v1575, %v1588
        %v1590 = vcombine.low %v1534, %v1566
        %v1591 = vcombine.high %v1534, %v1566
        %v1592 = vcombine.low %v1541, %v1573
        %v1593 = vcombine.high %v1541, %v1573
        %v1594 = vcombine.low %v1550, %v1582
        %v1595 = vcombine.high %v1550, %v1582
        %v1596 = vcombine.low %v1557, %v1589
        %v1597 = vcombine.high %v1557, %v1589
        %1602 = vrot.lane.b32.xlu0 %v1183, 64
        %v1603 = vpop.permute.xlu0 %1602
        %1604 = vrot.lane.b32.xlu0 %v1319, 64
        %v1605 = vpop.permute.xlu0 %1604
        %1606 = vrot.lane.b32.xlu0 %v1455, 64
        %v1607 = vpop.permute.xlu0 %1606
        %1608 = vrot.lane.b32.xlu0 %v1591, 64
        %v1609 = vpop.permute.xlu0 %1608
        %1618 = vrot.lane.b32.xlu0 %v1185, 64
        %v1619 = vpop.permute.xlu0 %1618
        %1620 = vrot.lane.b32.xlu0 %v1321, 64
        %v1621 = vpop.permute.xlu0 %1620
        %1622 = vrot.lane.b32.xlu0 %v1457, 64
        %v1623 = vpop.permute.xlu0 %1622
        %1624 = vrot.lane.b32.xlu0 %v1593, 64
        %v1625 = vpop.permute.xlu0 %1624
        %1634 = vrot.lane.b32.xlu0 %v1187, 64
        %v1635 = vpop.permute.xlu0 %1634
        %1636 = vrot.lane.b32.xlu0 %v1323, 64
        %v1637 = vpop.permute.xlu0 %1636
        %1638 = vrot.lane.b32.xlu0 %v1459, 64
        %v1639 = vpop.permute.xlu0 %1638
        %1640 = vrot.lane.b32.xlu0 %v1595, 64
        %v1641 = vpop.permute.xlu0 %1640
        %1650 = vrot.lane.b32.xlu0 %v1189, 64
        %v1651 = vpop.permute.xlu0 %1650
        %1652 = vrot.lane.b32.xlu0 %v1325, 64
        %v1653 = vpop.permute.xlu0 %1652
        %1654 = vrot.lane.b32.xlu0 %v1461, 64
        %v1655 = vpop.permute.xlu0 %1654
        %1656 = vrot.lane.b32.xlu0 %v1597, 64
        %v1657 = vpop.permute.xlu0 %1656
        %vm1662 = vcmask 523264
        %v1663 = vsel %vm1662, %v1182, %v1603
        %v1664 = vsel %vm1662, %v1318, %v1605
        %v1665 = vsel %vm1662, %v1454, %v1607
        %v1666 = vsel %vm1662, %v1590, %v1609
        %v1667 = vsel %vm1662, %v1184, %v1619
        %v1668 = vsel %vm1662, %v1320, %v1621
        %v1669 = vsel %vm1662, %v1456, %v1623
        %v1670 = vsel %vm1662, %v1592, %v1625
        %v1671 = vsel %vm1662, %v1186, %v1635
        %v1672 = vsel %vm1662, %v1322, %v1637
        %v1673 = vsel %vm1662, %v1458, %v1639
        %v1674 = vsel %vm1662, %v1594, %v1641
        %v1675 = vsel %vm1662, %v1188, %v1651
        %v1676 = vsel %vm1662, %v1324, %v1653
        %v1677 = vsel %vm1662, %v1460, %v1655
        %v1678 = vsel %vm1662, %v1596, %v1657
        %1679 = vst [vmem:[%s191] sm:$0xff] %v1663
        %1680 = vst [vmem:[%s191 + $0x8] sm:$0xff] %v1667
        %1681 = vst [vmem:[%s191 + $0x10] sm:$0xff] %v1671
        %1682 = vst [vmem:[%s191 + $0x18] sm:$0xff] %v1675
        %1683 = vst [vmem:[%s191 + $0x20] sm:$0xff] %v1664
        %1684 = vst [vmem:[%s191 + $0x28] sm:$0xff] %v1668
        %1685 = vst [vmem:[%s191 + $0x30] sm:$0xff] %v1672
        %1686 = vst [vmem:[%s191 + $0x38] sm:$0xff] %v1676
        %1687 = vst [vmem:[%s191 + $0x40] sm:$0xff] %v1665
        %1688 = vst [vmem:[%s191 + $0x48] sm:$0xff] %v1669
        %1689 = vst [vmem:[%s191 + $0x50] sm:$0xff] %v1673
        %1690 = vst [vmem:[%s191 + $0x58] sm:$0xff] %v1677
        %1691 = vst [vmem:[%s191 + $0x60] sm:$0xff] %v1666
        %1692 = vst [vmem:[%s191 + $0x68] sm:$0xff] %v1670
        %1693 = vst [vmem:[%s191 + $0x70] sm:$0xff] %v1674
        %1694 = vst [vmem:[%s191 + $0x78] sm:$0xff] %v1678
        %s1695 = sand.u32 %s115, 1
        %s1696 = scalar_lea.sflag [#allocation3], %s1695
        %s1697 = sand.u32 %s115, 1
        %s1698 = smul.addr %s1697, 128
        %s1699 = scalar_lea.vmem [#allocation2], %s1698
        // Predicated region
        $region37: #{tpu_custom_call.1} parent=35 // pred_check
          %p1700 = pneg %p125
        $region38: #{tpu_custom_call.1} parent=35 // pred_check_branch
          %1702 = sbr.rel (%p1700) target = $region40
        $region39: #{tpu_custom_call.1} parent=35 // pred_region
          %s1703 = smul.u32 4, %s18
          %s1705 = ssub.s32 2048, 2048
          %1706 = vsyncadd %s1696, %s1705
          %s1707 = smul.addr %s1703, 4
          %s1708 = smul.addr %s1707, 128
          %s1709 = scalar_lea.hbm %s4, %s1708
          %s1710 = sshll.u32 %s1699, 4
          %s1711 = int_to_ptr.vmem [resolvable:$true] %s1710
          %1716 = dma.vmem_to_hbm [thread:$0]  %s1711, 2048, %s1709, %s1696, 512, 512, 32
        $region40: #{tpu_custom_call.1} parent=35 // pred_fallthru
          _
      $region36: #{tpu_custom_call.1} parent=5 // pred_fallthru
        _
      %p1717 = scmp.le.s32.totalorder 2, %s13
      // Predicated region
      $region41: #{tpu_custom_call.1} parent=5 // pred_check
        %p1718 = pneg %p1717
      $region42: #{tpu_custom_call.1} parent=5 // pred_check_branch
        %1720 = sbr.rel (%p1718) target = $region44
      $region43: #{tpu_custom_call.1} parent=5 // pred_region
        %s1721 = ssub.s32 %s13, 2
        // Predicated region
        $region45: #{tpu_custom_call.1} parent=43 // pred_check
          %p1722 = pneg %p131
        $region46: #{tpu_custom_call.1} parent=43 // pred_check_branch
          %1724 = sbr.rel (%p1722) target = $region48
        $region47: #{tpu_custom_call.1} parent=43 // pred_region
          %s1725 = sand.u32 %s116, 1
          %s1726 = scalar_lea.sflag [#allocation3], %s1725
          %s1727 = sand.u32 %s116, 1
          %s1728 = smul.addr %s1727, 128
          %s1729 = scalar_lea.vmem [#allocation2], %s1728
          %1730 = dma.done %s1726, 2048
        $region48: #{tpu_custom_call.1} parent=43 // pred_fallthru
          _
      $region44: #{tpu_custom_call.1} parent=5 // pred_fallthru
        _
    $region6: #{tpu_custom_call.1} parent=1 // loop_footer
      %s17 = sadd.s32 1, %s13
    $region7: #{tpu_custom_call.1} parent=1 // loop_footer_branch
      %12 = sbr.rel target = $region3
    $region8: #{tpu_custom_call.1} parent=1 // loop_exit
      _
    %1731 = vsyncpa [#allocation3], 1
    %s1732 = scalar_lea.sflag [#allocation3], 1
    %1733 = vsyncpa %s1732, 1

</llo_original>
